<compile_context>
chip_gen: v6e
topology: v6e:2x2x1
jax: 0.10.0
libtpu: 0.0.40
codegen_flags: <defaults>
</compile_context>

<pallas_src>
import functools

import jax
import jax.numpy as jnp
from jax import lax
from jax.experimental import pallas as pl
from jax.experimental.pallas import tpu as pltpu

ALPHA = 0.25
GAMMA = 2.0  # == 2, so the focal weight is a plain square (no pow / EUP log-exp)


def _round_up(x, m):
    return ((x + m - 1) // m) * m


def _vmem_capacity_bytes():
    """Physical VMEM of the current chip (per TensorCore), with a safe fallback."""
    try:
        info = pltpu.get_tpu_info()
        cap = getattr(info, "vmem_capacity_bytes", None)
        if cap:
            return int(cap)
    except Exception:
        pass
    return 64 * 1024 * 1024  # v7x per-TC figure: conservative lower bound


def _vmem_plan():
    cap = _vmem_capacity_bytes()
    # ~96 MiB scoped limit on 128 MiB chips (v5e/v6e), ~48 MiB on v7x (64 MiB/TC).
    vmem_limit = int(min(cap * 3 // 4, 96 * 1024 * 1024))
    budget = vmem_limit // 2  # leave headroom for compiler temporaries
    return vmem_limit, budget


def _choose_tile_m(n, c, bytes_per_elem, vmem_budget):
    """Pick the batch tile from (1) a ~2 MiB-per-step logits DMA target,
    (2) an accurate VMEM budget, (3) a >=4-tiles rule for mid/large N."""
    c_pad = _round_up(max(c, 128), 128)      # lane padding of the logits block
    row_in_bytes = c_pad * bytes_per_elem    # one lane-padded row of logits

    # (1) DMA-size target: ~2 MiB of logits per grid step amortizes step overhead.
    target_dma_bytes = 2 * 1024 * 1024
    tile = max(8, target_dma_bytes // row_in_bytes)

    # (2) VMEM accounting per row:
    #       2x logits block (double-buffered)        : 2 * row_in_bytes
    #       f32 (tm, c_pad) temporaries (~4 live)    : 4 * 4 * c_pad
    #       2x targets block padded to 128 lanes     : 2 * 128 * 4
    per_row_vmem = 2 * row_in_bytes + 4 * 4 * c_pad + 2 * 128 * 4
    fixed_vmem = 2 * 8 * 128 * 4             # double-buffered (8,128) output slab
    vmem_rows = max(8, (vmem_budget - fixed_vmem) // per_row_vmem)
    tile = min(tile, vmem_rows)

    # (3) Keep >=4 tiles for mid/large N (>=2 per TC on v7x, keeps the pipeline
    #     fed), but never shrink below ~512 rows just to manufacture 4 tiles.
    n8 = _round_up(n, 8)
    if n8 >= 4 * 512:
        tile = min(tile, _round_up((n8 + 3) // 4, 8))

    tile = min(tile, n8)                     # don't over-tile tiny problems
    return max(8, (tile // 8) * 8)           # sublane multiple


def _focal_loss_kernel(logits_ref, targets_ref, out_ref, *, n_valid, exp_dtype):
    logits = logits_ref[...].astype(jnp.float32)   # (tm, C) f32
    tgt = targets_ref[...]                          # (tm, 1) int32
    tm, c = logits.shape

    # one-hot selection of the target column (no dynamic gather on TPU vregs)
    col = lax.broadcasted_iota(jnp.int32, (tm, c), 1)
    onehot = col == tgt                             # (tm, C) bool

    # numerically stable log-sum-exp; the big exp may run in bf16 (v7x/v6e path)
    m = jnp.max(logits, axis=-1, keepdims=True)     # (tm, 1)
    e = jnp.exp((logits - m).astype(exp_dtype))     # (tm, C)
    sumexp = jnp.sum(e.astype(jnp.float32), axis=-1, keepdims=True)  # (tm, 1) f32
    tgt_logit = jnp.sum(jnp.where(onehot, logits, 0.0), axis=-1, keepdims=True)

    ce = m + jnp.log(sumexp) - tgt_logit            # (tm, 1) = -log p_target
    p = jnp.exp(-ce)                                # (tm, 1) EUP op; no 2nd (tm,C) reduce
    one_minus_p = 1.0 - p
    focal = ALPHA * one_minus_p * one_minus_p * ce  # gamma == 2 -> single VPU mul

    # mask rows that are padding (N rounded up to a tile multiple)
    row = pl.program_id(0) * tm + lax.broadcasted_iota(jnp.int32, (tm, 1), 0)
    focal = jnp.where(row < n_valid, focal, 0.0)

    # per-tile partial sum written to this tile's lane-dense (8,128) slab
    psum = jnp.sum(focal)
    lane = lax.broadcasted_iota(jnp.int32, (8, 128), 1)
    sub = lax.broadcasted_iota(jnp.int32, (8, 128), 0)
    out_ref[...] = jnp.where((lane == 0) & (sub == 0), psum, 0.0)


def focal_loss(logits, targets, *, tile_m=None, exp_dtype=None):
    """logits: (N, C) float32 or bfloat16; targets: (N,) int class indices.
    Returns the scalar mean focal loss (matches PyTorch FocalLoss.forward)."""
    n, c = logits.shape
    targets = targets.astype(jnp.int32)
    bytes_per_elem = jnp.dtype(logits.dtype).itemsize

    if exp_dtype is None:
        # bf16 inputs -> do the (tm, C) exp in bf16 (keeps v7x/v6e memory-bound;
        # correctness-neutral everywhere, perf-neutral on v5e which lacks bf16 EUP).
        exp_dtype = jnp.bfloat16 if logits.dtype == jnp.bfloat16 else jnp.float32

    vmem_limit, vmem_budget = _vmem_plan()
    if tile_m is None:
        tile_m = _choose_tile_m(n, c, bytes_per_elem, vmem_budget)
    assert tile_m % 8 == 0, "tile_m must be a multiple of 8 (sublane)"

    n_pad = _round_up(n, tile_m)
    if n_pad != n:
        logits = jnp.pad(logits, ((0, n_pad - n), (0, 0)))
        targets = jnp.pad(targets, (0, n_pad - n))
    targets_2d = targets.reshape(n_pad, 1)
    num_tiles = n_pad // tile_m

    partials = pl.pallas_call(
        functools.partial(_focal_loss_kernel, n_valid=n, exp_dtype=exp_dtype),
        out_shape=jax.ShapeDtypeStruct((8, 128 * num_tiles), jnp.float32),
        grid_spec=pltpu.PrefetchScalarGridSpec(
            num_scalar_prefetch=0,
            grid=(num_tiles,),
            in_specs=[
                pl.BlockSpec((tile_m, c), lambda i: (i, 0)),
                pl.BlockSpec((tile_m, 1), lambda i: (i, 0)),
            ],
            out_specs=pl.BlockSpec((8, 128), lambda i: (0, i)),
        ),
        compiler_params=pltpu.CompilerParams(
            dimension_semantics=("parallel",),   # independent tiles -> both TCs on v7x
            vmem_limit_bytes=vmem_limit,         # generation-aware; tile fits well under
        ),
    )(logits, targets_2d)

    # partials has exactly one nonzero entry per tile; sum + mean in the wrapper
    return jnp.sum(partials) / jnp.float32(n)


def _reference_focal_loss(logits, targets):
    # plain-JAX reference (mirrors F.cross_entropy reduction='none' + focal term)
    log_probs = jax.nn.log_softmax(logits.astype(jnp.float32), axis=-1)
    ce = -jnp.take_along_axis(log_probs, targets[:, None], axis=-1)[:, 0]
    p = jnp.exp(-ce)
    return jnp.mean(ALPHA * (1.0 - p) ** GAMMA * ce)


if __name__ == "__main__":
    key = jax.random.PRNGKey(0)
    k1, k2, k3, k4, k5, k6, k7, k8 = jax.random.split(key, 8)

    # Case 1: small canonical shapes (batch=32, classes=10), auto tile.
    N, C = 32, 10
    logits = jax.random.normal(k1, (N, C), dtype=jnp.float32)
    targets = jax.random.randint(k2, (N,), 0, C, dtype=jnp.int32)
    out = jax.block_until_ready(focal_loss(logits, targets))
    ref = _reference_focal_loss(logits, targets)
    assert jnp.allclose(out, ref, atol=1e-5, rtol=1e-5), (out, ref)

    # Case 2: N not divisible by 8 -> exercises padding + in-kernel row mask.
    N2 = 19
    logits2 = jax.random.normal(k3, (N2, C), dtype=jnp.float32)
    targets2 = jax.random.randint(k4, (N2,), 0, C, dtype=jnp.int32)
    out2 = jax.block_until_ready(focal_loss(logits2, targets2))
    ref2 = _reference_focal_loss(logits2, targets2)
    assert jnp.allclose(out2, ref2, atol=1e-5, rtol=1e-5), (out2, ref2)

    # Case 3: multiple tiles on the "parallel" grid axis (explicit small tile).
    N3 = 256
    logits3 = jax.random.normal(k5, (N3, C), dtype=jnp.float32)
    targets3 = jax.random.randint(k6, (N3,), 0, C, dtype=jnp.int32)
    out3 = jax.block_until_ready(focal_loss(logits3, targets3, tile_m=64))
    ref3 = _reference_focal_loss(logits3, targets3)
    assert jnp.allclose(out3, ref3, atol=1e-5, rtol=1e-5), (out3, ref3)

    # Case 4: bf16 logits -> exercises the bf16 exp path (looser tolerance,
    #         reference computed from the same bf16-quantized logits).
    N4, C4 = 640, 16
    logits4 = jax.random.normal(k7, (N4, C4), dtype=jnp.float32).astype(jnp.bfloat16)
    targets4 = jax.random.randint(k8, (N4,), 0, C4, dtype=jnp.int32)
    out4 = jax.block_until_ready(focal_loss(logits4, targets4))
    ref4 = _reference_focal_loss(logits4.astype(jnp.float32), targets4)
    assert jnp.allclose(out4, ref4, atol=2e-3, rtol=2e-2), (out4, ref4)

    print("KERNEL_OK")
</pallas_src>

<mosaic_0001>
module attributes {stable_mosaic.version = 11 : i64} {
  func.func @_focal_loss_kernel(%arg0: i32, %arg1: memref<32x10xf32, #tpu.memory_space<vmem>>, %arg2: memref<32x1xi32, #tpu.memory_space<vmem>>, %arg3: memref<8x128xf32, #tpu.memory_space<vmem>>) attributes {dimension_semantics = [#tpu.dimension_semantics<parallel>], iteration_bounds = array<i64: 1>, scalar_prefetch = 0 : i64, scratch_operands = 0 : i64, tpu.core_type = #tpu.core_type<tc>, window_params = [{transform_indices = @transform_0, window_bounds = array<i64: 32, 10>}, {transform_indices = @transform_1, window_bounds = array<i64: 32, 1>}, {transform_indices = @transform_2, window_bounds = array<i64: 8, 128>}]} {
    %c0 = arith.constant 0 : index
    %c0_0 = arith.constant 0 : index
    %0 = vector.load %arg1[%c0, %c0_0] : memref<32x10xf32, #tpu.memory_space<vmem>>, vector<32x10xf32>
    %c0_1 = arith.constant 0 : index
    %c0_2 = arith.constant 0 : index
    %1 = vector.load %arg2[%c0_1, %c0_2] : memref<32x1xi32, #tpu.memory_space<vmem>>, vector<32x1xi32>
    %2 = tpu.iota {dimensions = array<i32: 1>} : vector<32x10xi32>
    %3 = vector.broadcast %1 : vector<32x1xi32> to vector<32x10xi32>
    %4 = arith.cmpi eq, %2, %3 : vector<32x10xi32>
    %cst = arith.constant dense<0xFF800000> : vector<32xf32>
    %5 = vector.multi_reduction <maximumf>, %0, %cst [1] : vector<32x10xf32> to vector<32xf32>
    %6 = vector.shape_cast %5 : vector<32xf32> to vector<32x1xf32>
    %7 = vector.broadcast %6 : vector<32x1xf32> to vector<32x10xf32>
    %8 = arith.subf %0, %7 : vector<32x10xf32>
    %9 = math.exp %8 : vector<32x10xf32>
    %cst_3 = arith.constant dense<0.000000e+00> : vector<32xf32>
    %10 = vector.multi_reduction <add>, %9, %cst_3 [1] : vector<32x10xf32> to vector<32xf32>
    %11 = vector.shape_cast %10 : vector<32xf32> to vector<32x1xf32>
    %cst_4 = arith.constant 0.000000e+00 : f32
    %12 = vector.broadcast %cst_4 : f32 to vector<32x10xf32>
    %13 = arith.select %4, %0, %12 : vector<32x10xi1>, vector<32x10xf32>
    %cst_5 = arith.constant dense<0.000000e+00> : vector<32xf32>
    %14 = vector.multi_reduction <add>, %13, %cst_5 [1] : vector<32x10xf32> to vector<32xf32>
    %15 = vector.shape_cast %14 : vector<32xf32> to vector<32x1xf32>
    %16 = math.log %11 : vector<32x1xf32>
    %17 = arith.addf %6, %16 : vector<32x1xf32>
    %18 = arith.subf %17, %15 : vector<32x1xf32>
    %cst_6 = arith.constant 0.000000e+00 : f32
    %19 = vector.broadcast %cst_6 : f32 to vector<32x1xf32>
    %20 = arith.subf %19, %18 : vector<32x1xf32>
    %21 = math.exp %20 : vector<32x1xf32>
    %cst_7 = arith.constant 1.000000e+00 : f32
    %22 = vector.broadcast %cst_7 : f32 to vector<32x1xf32>
    %23 = arith.subf %22, %21 : vector<32x1xf32>
    %cst_8 = arith.constant 2.500000e-01 : f32
    %24 = vector.broadcast %cst_8 : f32 to vector<32x1xf32>
    %25 = arith.mulf %24, %23 : vector<32x1xf32>
    %26 = arith.mulf %25, %23 : vector<32x1xf32>
    %27 = arith.mulf %26, %18 : vector<32x1xf32>
    %c32_i32 = arith.constant 32 : i32
    %28 = arith.muli %arg0, %c32_i32 : i32
    %29 = tpu.iota {dimensions = array<i32: 0>} : vector<32x1xi32>
    %30 = vector.broadcast %28 : i32 to vector<32x1xi32>
    %31 = arith.addi %30, %29 : vector<32x1xi32>
    %c32_i32_9 = arith.constant 32 : i32
    %32 = vector.broadcast %c32_i32_9 : i32 to vector<32x1xi32>
    %33 = arith.cmpi slt, %31, %32 : vector<32x1xi32>
    %cst_10 = arith.constant 0.000000e+00 : f32
    %34 = vector.broadcast %cst_10 : f32 to vector<32x1xf32>
    %35 = arith.select %33, %27, %34 : vector<32x1xi1>, vector<32x1xf32>
    %36 = vector.shape_cast %35 : vector<32x1xf32> to vector<1x32x1xf32>
    %cst_11 = arith.constant dense<0.000000e+00> : vector<1xf32>
    %37 = vector.multi_reduction <add>, %36, %cst_11 [1, 2] : vector<1x32x1xf32> to vector<1xf32>
    %38 = vector.shape_cast %37 : vector<1xf32> to vector<1x1x1xf32>
    %39 = vector.extract %38[0, 0, 0] : f32 from vector<1x1x1xf32>
    %40 = tpu.iota {dimensions = array<i32: 1>} : vector<8x128xi32>
    %41 = tpu.iota {dimensions = array<i32: 0>} : vector<8x128xi32>
    %c0_i32 = arith.constant 0 : i32
    %42 = vector.broadcast %c0_i32 : i32 to vector<8x128xi32>
    %43 = arith.cmpi eq, %40, %42 : vector<8x128xi32>
    %c0_i32_12 = arith.constant 0 : i32
    %44 = vector.broadcast %c0_i32_12 : i32 to vector<8x128xi32>
    %45 = arith.cmpi eq, %41, %44 : vector<8x128xi32>
    %46 = arith.andi %43, %45 : vector<8x128xi1>
    %cst_13 = arith.constant 0.000000e+00 : f32
    %47 = vector.broadcast %39 : f32 to vector<8x128xf32>
    %48 = vector.broadcast %cst_13 : f32 to vector<8x128xf32>
    %49 = arith.select %46, %47, %48 : vector<8x128xi1>, vector<8x128xf32>
    %c0_14 = arith.constant 0 : index
    %c0_15 = arith.constant 0 : index
    %50 = vector.load %arg3[%c0_14, %c0_15] : memref<8x128xf32, #tpu.memory_space<vmem>>, vector<8x128xf32>
    tpu.vector_store %arg3[%c0_14, %c0_15], %49 {strides = array<i32>} : memref<8x128xf32, #tpu.memory_space<vmem>>, vector<8x128xf32>,
    return
  }
  func.func @transform_0(%arg0: i32) -> (i32, i32) {
    %c0_i32 = arith.constant 0 : i32
    %c0_i32_0 = arith.constant 0 : i32
    return %arg0, %c0_i32 : i32, i32
  }
  func.func @transform_1(%arg0: i32) -> (i32, i32) {
    %c0_i32 = arith.constant 0 : i32
    %c0_i32_0 = arith.constant 0 : i32
    return %arg0, %c0_i32 : i32, i32
  }
  func.func @transform_2(%arg0: i32) -> (i32, i32) {
    %c0_i32 = arith.constant 0 : i32
    %c0_i32_0 = arith.constant 0 : i32
    return %c0_i32, %arg0 : i32, i32
  }
}

</mosaic_0001>

<llo_original>
// kernel: tpu_custom_call.1
$region0: #{tpu_custom_call.1}
  #allocation0 [shape = 'u32[]', space=smem, size = 0x4, offset = 0x4, fixed_abs, tag = 'smem constant byte address 0x4 - core index']
  #allocation1 [shape = 'u32[144,128]{1,0:T(1,128)}', space=vmem, size = 0x12000, scoped, tag = 'internal scratch']
  %s0 = inlined_call_operand.vmem [shape: f32[32,10], index: 0, kind: input, shape index: {}]
  %s1 = inlined_call_operand.vmem [shape: s32[32,1], index: 1, kind: input, shape index: {}]
  %s2 = inlined_call_operand.hbm [shape: f32[8,128], index: 2, kind: output, shape index: {}]
  %s3 = sld [smem:[#allocation0]]
  $region18: #{tpu_custom_call.1} parent=0
    _
  %s5 = ssub.s32 1, %s3
  %s6 = scalar_select 0, %s5, %s3
  $region1: #{tpu_custom_call.1} parent=0
    #allocation2 [shape = 'u8[4096]{0}', space=vmem, size = 0x1000, scoped, tag = 'output window, operand 0, single buffered']
    #allocation3 [shape = 's32[1]{0}', space=sflag, size = 0x4, scoped, tag = 'scoped memory for tpu_custom_call.1']
    %7 = vsyncpa [#allocation3], 0
    // Predicated region
    $region2: #{tpu_custom_call.1} parent=1 // pred_check
      _
    $region3: #{tpu_custom_call.1} parent=1 // pred_check_branch
      %9 = sbr.rel (0) target = $region5
    $region4: #{tpu_custom_call.1} parent=1 // pred_region
      _
    $region5: #{tpu_custom_call.1} parent=1 // pred_fallthru
      _
    // Predicated region
    $region6: #{tpu_custom_call.1} parent=1 // pred_check
      _
    $region7: #{tpu_custom_call.1} parent=1 // pred_check_branch
      %11 = sbr.rel (0) target = $region9
    $region8: #{tpu_custom_call.1} parent=1 // pred_region
      _
    $region9: #{tpu_custom_call.1} parent=1 // pred_fallthru
      _
    %v12 = vld [vmem:[%s0] sm:$0xff]
    %v13 = vld [vmem:[%s0 + $0x8] sm:$0xff]
    %v14 = vld [vmem:[%s0 + $0x10] sm:$0xff]
    %v15 = vld [vmem:[%s0 + $0x18] sm:$0xff]
    %v16 = vld [vmem:[%s1] sm:$0xff]
    %v17 = vld [vmem:[%s1 + $0x8] sm:$0xff]
    %v18 = vld [vmem:[%s1 + $0x10] sm:$0xff]
    %v19 = vld [vmem:[%s1 + $0x18] sm:$0xff]
    %v20 = vlaneseq
    %v21 = vand.u32 %v20, 127
    %22 = vset.pattern.permute.xlu0 0
    %23 = vperm.xlu0 %22, %v16
    %v24 = vpop.permute.xlu0 %23
    %25 = vset.pattern.permute.xlu0 0
    %26 = vperm.xlu0 %25, %v17
    %v27 = vpop.permute.xlu0 %26
    %28 = vset.pattern.permute.xlu0 0
    %29 = vperm.xlu0 %28, %v18
    %v30 = vpop.permute.xlu0 %29
    %31 = vset.pattern.permute.xlu0 0
    %32 = vperm.xlu0 %31, %v19
    %v33 = vpop.permute.xlu0 %32
    %vm34 = vcmp.eq.s32.totalorder %v21, %v24
    %vm35 = vcmp.eq.s32.totalorder %v21, %v27
    %vm36 = vcmp.eq.s32.totalorder %v21, %v30
    %vm37 = vcmp.eq.s32.totalorder %v21, %v33
    %vm38 = vcmask 80896
    %v39 = vsel %vm38, %v12, -inf
    %40 = vmax.xlane.f32.xlu0 %v39
    %v41 = vpop.xlane.xlu0 %40
    %v42 = vsel %vm38, %v13, -inf
    %43 = vmax.xlane.f32.xlu0 %v42
    %v44 = vpop.xlane.xlu0 %43
    %v45 = vsel %vm38, %v14, -inf
    %46 = vmax.xlane.f32.xlu0 %v45
    %v47 = vpop.xlane.xlu0 %46
    %v48 = vsel %vm38, %v15, -inf
    %49 = vmax.xlane.f32.xlu0 %v48
    %v50 = vpop.xlane.xlu0 %49
    %v51 = vsub.f32 %v12, %v41
    %v52 = vsub.f32 %v13, %v44
    %v53 = vsub.f32 %v14, %v47
    %v54 = vsub.f32 %v15, %v50
    %v55 = vmul.f32 %v51, 1.442695
    %v56 = vpow.pop %v55
    %v57 = vmul.f32 %v52, 1.442695
    %v58 = vpow.pop %v57
    %v59 = vmul.f32 %v53, 1.442695
    %v60 = vpow.pop %v59
    %v61 = vmul.f32 %v54, 1.442695
    %v62 = vpow.pop %v61
    %v63 = vsel %vm38, %v56, 0.0
    %64 = vadd.xlane.f32.xlu0 %v63
    %v65 = vpop.xlane.xlu0 %64
    %v66 = vsel %vm38, %v58, 0.0
    %67 = vadd.xlane.f32.xlu0 %v66
    %v68 = vpop.xlane.xlu0 %67
    %v69 = vsel %vm38, %v60, 0.0
    %70 = vadd.xlane.f32.xlu0 %v69
    %v71 = vpop.xlane.xlu0 %70
    %v72 = vsel %vm38, %v62, 0.0
    %73 = vadd.xlane.f32.xlu0 %v72
    %v74 = vpop.xlane.xlu0 %73
    %v75 = vsel %vm34, %v12, 0.0
    %v76 = vsel %vm35, %v13, 0.0
    %v77 = vsel %vm36, %v14, 0.0
    %v78 = vsel %vm37, %v15, 0.0
    %v79 = vsel %vm38, %v75, 0.0
    %80 = vadd.xlane.f32.xlu0 %v79
    %v81 = vpop.xlane.xlu0 %80
    %v82 = vsel %vm38, %v76, 0.0
    %83 = vadd.xlane.f32.xlu0 %v82
    %v84 = vpop.xlane.xlu0 %83
    %v85 = vsel %vm38, %v77, 0.0
    %86 = vadd.xlane.f32.xlu0 %v85
    %v87 = vpop.xlane.xlu0 %86
    %v88 = vsel %vm38, %v78, 0.0
    %89 = vadd.xlane.f32.xlu0 %v88
    %v90 = vpop.xlane.xlu0 %89
    %v91 = vlog2.pop %v65
    %v92 = vmul.f32 %v91, 0.6931472
    %v93 = vlog2.pop %v68
    %v94 = vmul.f32 %v93, 0.6931472
    %v95 = vlog2.pop %v71
    %v96 = vmul.f32 %v95, 0.6931472
    %v97 = vlog2.pop %v74
    %v98 = vmul.f32 %v97, 0.6931472
    %v99 = vadd.f32 %v41, %v92
    %v100 = vadd.f32 %v44, %v94
    %v101 = vadd.f32 %v47, %v96
    %v102 = vadd.f32 %v50, %v98
    %v103 = vsub.f32 %v99, %v81
    %v104 = vsub.f32 %v100, %v84
    %v105 = vsub.f32 %v101, %v87
    %v106 = vsub.f32 %v102, %v90
    %v107 = vsub.f32 0.0, %v103
    %v108 = vsub.f32 0.0, %v104
    %v109 = vsub.f32 0.0, %v105
    %v110 = vsub.f32 0.0, %v106
    %v111 = vmul.f32 %v107, 1.442695
    %v112 = vpow.pop %v111
    %v113 = vmul.f32 %v108, 1.442695
    %v114 = vpow.pop %v113
    %v115 = vmul.f32 %v109, 1.442695
    %v116 = vpow.pop %v115
    %v117 = vmul.f32 %v110, 1.442695
    %v118 = vpow.pop %v117
    %v119 = vsub.f32 1.0, %v112
    %v120 = vsub.f32 1.0, %v114
    %v121 = vsub.f32 1.0, %v116
    %v122 = vsub.f32 1.0, %v118
    %v123 = vmul.f32 %v119, 0.25
    %v124 = vmul.f32 %v120, 0.25
    %v125 = vmul.f32 %v121, 0.25
    %v126 = vmul.f32 %v122, 0.25
    %v127 = vmul.f32 %v123, %v119
    %v128 = vmul.f32 %v124, %v120
    %v129 = vmul.f32 %v125, %v121
    %v130 = vmul.f32 %v126, %v122
    %v131 = vmul.f32 %v127, %v103
    %v132 = vmul.f32 %v128, %v104
    %v133 = vmul.f32 %v129, %v105
    %v134 = vmul.f32 %v130, %v106
    %s135 = smul.u32 0, 32
    %v136 = vlaneseq
    %v137 = vshrl.u32 %v136, 7
    %v138 = vadd.s32 %v137, 8
    %v139 = vadd.s32 %v137, 16
    %v140 = vadd.s32 %v137, 24
    %v141 = vstv %s135
    %v142 = vadd.s32 %v141, %v137
    %v143 = vadd.s32 %v141, %v138
    %v144 = vadd.s32 %v141, %v139
    %v145 = vadd.s32 %v141, %v140
    %vm146 = vcmp.lt.s32.totalorder %v142, 32
    %vm147 = vcmp.lt.s32.totalorder %v143, 32
    %vm148 = vcmp.lt.s32.totalorder %v144, 32
    %vm149 = vcmp.lt.s32.totalorder %v145, 32
    %v150 = vsel %vm146, %v131, 0.0
    %v151 = vsel %vm147, %v132, 0.0
    %v152 = vsel %vm148, %v133, 0.0
    %v153 = vsel %vm149, %v134, 0.0
    %vm154 = vcmask 7168
    %v155 = vsel %vm154, %v150, 0.0
    %v156 = vsel %vm154, %v151, 0.0
    %v157 = vadd.f32 %v155, %v156
    %v158 = vsel %vm154, %v152, 0.0
    %v159 = vadd.f32 %v157, %v158
    %v160 = vsel %vm154, %v153, 0.0
    %v161 = vadd.f32 %v159, %v160
    %162 = vadd.xlane.f32.xlu0 %v161
    %v163 = vpop.xlane.xlu0 %162
    %v164 = vrot.slane %v163, 4
    %v165 = vadd.f32 %v163, %v164
    %v166 = vrot.slane %v165, 2
    %v167 = vadd.f32 %v165, %v166
    %v168 = vrot.slane %v167, 1
    %v169 = vadd.f32 %v167, %v168
    %s170 = vtos %v169
    %vm171 = vcmp.eq.s32.totalorder %v21, 0
    %vm172 = vcmp.eq.s32.totalorder %v137, 0
    %vm173 = vmand %vm171, %vm172
    %v174 = vstv %s170
    %v175 = vsel %vm173, %v174, 0.0
    %176 = vst [vmem:[#allocation2] sm:$0xff] %v175
    // Predicated region
    $region10: #{tpu_custom_call.1} parent=1 // pred_check
      _
    $region11: #{tpu_custom_call.1} parent=1 // pred_check_branch
      %178 = sbr.rel (0) target = $region13
    $region12: #{tpu_custom_call.1} parent=1 // pred_region
      %s180 = ssub.s32 128, 128
      %181 = vsyncadd [#allocation3], %s180
      %s183 = sshll.u32 [#allocation2], 4
      %s184 = int_to_ptr.vmem [resolvable:$true] %s183
      %186 = dma.vmem_to_hbm [thread:$0]  %s184, 128, %s2, [#allocation3]
    $region13: #{tpu_custom_call.1} parent=1 // pred_fallthru
      _
    // Predicated region
    $region14: #{tpu_custom_call.1} parent=1 // pred_check
      _
    $region15: #{tpu_custom_call.1} parent=1 // pred_check_branch
      %188 = sbr.rel (0) target = $region17
    $region16: #{tpu_custom_call.1} parent=1 // pred_region
      %189 = dma.done [#allocation3], 128
    $region17: #{tpu_custom_call.1} parent=1 // pred_fallthru
      _
    %190 = vsyncpa [#allocation3], 1

</llo_original>
